<compile_context>
chip_gen: v6e
topology: v6e:2x2x1
jax: 0.10.0
libtpu: 0.0.40
codegen_flags: <defaults>
</compile_context>

<pallas_src>
import math
from functools import partial

import jax
import jax.numpy as jnp
from jax.experimental import pallas as pl
from jax.experimental.pallas import tpu as pltpu


# ----------------------------------------------------------------------------
# hardware-aware tiling helpers
# ----------------------------------------------------------------------------

_LANE = 128
_SUBLANE = 8


def _round_up(x, m):
    return (x + m - 1) // m * m


def _pick_tile(dim, target, base):
    """Largest multiple of `base` <= target that divides `dim`; else the full dim
    (full-dim blocks are always legal).  Only used for weight-derived dims, which
    are multiples of 128 in practice; the unbounded row dim (B*N) is padded."""
    if dim <= target:
        return dim
    t = (target // base) * base
    while t >= base:
        if dim % t == 0:
            return t
        t -= base
    return dim


def _tpu_vmem_capacity():
    try:
        return int(pltpu.get_tpu_info().vmem_capacity_bytes)
    except Exception:
        return 128 * 1024 * 1024


_VMEM_CAP = _tpu_vmem_capacity()
_SMALL_VMEM = _VMEM_CAP <= 64 * 1024 * 1024          # v7x: 64 MiB per TensorCore
_VMEM_LIMIT = (40 if _SMALL_VMEM else 96) * 1024 * 1024
_TM_TARGET = 512 if _SMALL_VMEM else 1024            # row tiles
_TN_TARGET = 256 if _SMALL_VMEM else 512             # output-column tiles
_TH_TARGET = 512 if _SMALL_VMEM else 1024            # FFN hidden tiles


def _head_group_size(heads, dim_head):
    # smallest divisor g of `heads` with g*dim_head a multiple of 128 lanes
    # (so group slices are lane-aligned and MXU contraction is not wasted);
    # fall back to all heads (full-dim blocks are always legal).
    for g in range(1, heads + 1):
        if heads % g == 0 and (g * dim_head) % _LANE == 0:
            return g
    return heads


# ----------------------------------------------------------------------------
# Pallas kernels
# ----------------------------------------------------------------------------

def _ln_linear_kernel(x_ref, g_ref, b_ref, w_ref, wb_ref, o_ref, hnorm_ref):
    # o = LN(x) @ W + bias.  LN (f32) is computed once per row tile (j == 0) and
    # cached in a bf16 scratch so the MXU operand is ready for every column tile.
    j = pl.program_id(1)

    @pl.when(j == 0)
    def _():
        x = x_ref[...]
        mu = jnp.mean(x, axis=-1, keepdims=True)
        var = jnp.mean((x - mu) ** 2, axis=-1, keepdims=True)
        h = (x - mu) * jax.lax.rsqrt(var + 1e-5) * g_ref[...] + b_ref[...]
        hnorm_ref[...] = h.astype(hnorm_ref.dtype)

    acc = jnp.dot(hnorm_ref[...], w_ref[...], preferred_element_type=jnp.float32)
    o_ref[...] = (acc + wb_ref[...]).astype(o_ref.dtype)


def _ln_ffn_residual_kernel(x_ref, g_ref, b_ref, w1_ref, b1_ref, w2_ref, b2_ref,
                            o_ref, hnorm_ref, acc_ref):
    # x = x + W2 @ GELU(W1 @ LN(x) + b1) + b2, hidden dim streamed in tiles.
    # grid = (row tiles i, hidden tiles j); j is the (innermost) reduction axis.
    j = pl.program_id(1)

    @pl.when(j == 0)
    def _():
        x = x_ref[...]
        mu = jnp.mean(x, axis=-1, keepdims=True)
        var = jnp.mean((x - mu) ** 2, axis=-1, keepdims=True)
        h = (x - mu) * jax.lax.rsqrt(var + 1e-5) * g_ref[...] + b_ref[...]
        hnorm_ref[...] = h.astype(hnorm_ref.dtype)
        acc_ref[...] = jnp.zeros_like(acc_ref)

    h = (jnp.dot(hnorm_ref[...], w1_ref[...], preferred_element_type=jnp.float32)
         + b1_ref[...])
    # exact (erf) GELU in f32, matching torch.nn.GELU() default
    h = 0.5 * h * (1.0 + jax.lax.erf(h * (1.0 / math.sqrt(2.0))))
    acc_ref[...] += jnp.dot(h.astype(jnp.bfloat16), w2_ref[...],
                            preferred_element_type=jnp.float32)

    @pl.when(j == pl.num_programs(1) - 1)
    def _():
        o_ref[...] = x_ref[...] + acc_ref[...] + b2_ref[...]


def _favor_attention_kernel(qkv_ref, proj_ref, ones_ref, wo_ref, bo_ref, r_ref,
                            o_ref, acc_ref, *, heads_per_group, dim_head,
                            nb_features):
    # Grid = (batch, head-group).  One grid step handles all heads of one group of
    # one batch element, fuses the output projection + bias + residual:
    #   out[b] = resid[b] + sum_g ( FAVOR_g(qkv_g[b]) @ Wo[g rows] ) + bo
    # qkv:  (1, N, 3*g*dh) bf16, packed [q_group | k_group | v_group], head-major.
    # proj: (g*dh, g*m) bf16, block-diag per head, pre-scaled by dh**-0.25.
    # ones: (g*dh, g) bf16 block-ones (sum(x^2) per head on the MXU).
    # wo:   (g*dh, D) bf16 (this group's rows); bo: (1, D) f32; r/o: (1, N, D) f32.
    gi = pl.program_id(1)
    g, dh, m = heads_per_group, dim_head, nb_features
    gd = g * dh

    @pl.when(gi == 0)
    def _():
        acc_ref[...] = jnp.zeros_like(acc_ref)

    qkv = qkv_ref[0]                                   # (N, 3*g*dh) bf16
    q_g = qkv[:, 0 * gd:1 * gd]
    k_g = qkv[:, 1 * gd:2 * gd]
    v_g = qkv[:, 2 * gd:3 * gd]
    proj = proj_ref[...]                               # (g*dh, g*m) bf16

    # feature projection for every head of the group: one MXU matmul each
    qd_all = jnp.dot(q_g, proj, preferred_element_type=jnp.float32)  # (N, g*m)
    kd_all = jnp.dot(k_g, proj, preferred_element_type=jnp.float32)

    # sum(x^2) per head via a block-ones contraction (MXU) instead of XLU reduces
    ones_bd = ones_ref[...]                            # (g*dh, g) bf16
    q_sq = jnp.dot(q_g * q_g, ones_bd, preferred_element_type=jnp.float32)  # (N, g)
    k_sq = jnp.dot(k_g * k_g, ones_bd, preferred_element_type=jnp.float32)

    dn2 = float(dh) ** (-0.5)                          # data_normalizer ** 2
    ratio = float(m) ** (-0.5)
    eps = 1e-4                                         # softmax_kernel eps

    out_acc = jnp.zeros(acc_ref.shape, jnp.float32)    # (N, D) partial projection
    for h in range(g):                                 # static unrolled head loop
        qd = qd_all[:, h * m:(h + 1) * m]              # (N, m) f32
        kd = kd_all[:, h * m:(h + 1) * m]
        v_h = v_g[:, h * dh:(h + 1) * dh]              # (N, dh) bf16

        q_diag = q_sq[:, h:h + 1] * (0.5 * dn2)        # (N, 1)
        k_diag = k_sq[:, h:h + 1] * (0.5 * dn2)
        q_max = jnp.max(qd, axis=-1, keepdims=True)                      # per-row
        k_max = jnp.max(jnp.max(kd, axis=-1, keepdims=True), axis=0,
                        keepdims=True)                                   # global

        # exp math in f32 (accuracy), MXU operands cast to bf16 below
        q_feat = ratio * (jnp.exp(qd - q_diag - q_max) + eps)            # (N, m)
        k_feat = ratio * (jnp.exp(kd - k_diag - k_max) + eps)

        # denominator on the MXU: q_feat . sum_n(k_feat)  (kept f32 for accuracy;
        # features have a +eps floor, so the denominator is strictly positive and
        # the approx EUP reciprocal is safe)
        k_sum = jnp.sum(k_feat, axis=0, keepdims=True)                   # (1, m)
        denom = jax.lax.dot_general(
            q_feat, k_sum, dimension_numbers=(((1,), (1,)), ((), ())),
            preferred_element_type=jnp.float32)                          # (N, 1)
        d_inv = pl.reciprocal(denom, approx=True)

        q_b = q_feat.astype(jnp.bfloat16)
        k_b = k_feat.astype(jnp.bfloat16)
        context = jax.lax.dot_general(                                   # (m, dh)
            k_b, v_h, dimension_numbers=(((0,), (0,)), ((), ())),
            preferred_element_type=jnp.float32)
        out_h = jnp.dot(q_b, context.astype(jnp.bfloat16),
                        preferred_element_type=jnp.float32) * d_inv      # (N, dh)

        # fused output projection: consume out_h immediately (no concat, no
        # (N, inner) slab, no extra HBM round trip)
        out_acc = out_acc + jnp.dot(out_h.astype(jnp.bfloat16),
                                    wo_ref[h * dh:(h + 1) * dh, :],
                                    preferred_element_type=jnp.float32)

    acc_ref[...] += out_acc

    @pl.when(gi == pl.num_programs(1) - 1)
    def _():
        o_ref[0] = (r_ref[0] + acc_ref[...] + bo_ref[...]).astype(o_ref.dtype)


# ----------------------------------------------------------------------------
# Pallas wrappers
# ----------------------------------------------------------------------------

def pallas_ln_linear(x, g, b, w, wb, *, out_dtype=jnp.bfloat16,
                     tm_target=None, tn_target=None):
    tm_target = tm_target or _TM_TARGET
    tn_target = tn_target or _TN_TARGET
    M, D = x.shape
    O = w.shape[1]
    TM = min(tm_target, _round_up(M, _SUBLANE))
    Mp = _round_up(M, TM)
    if Mp != M:                                       # pad rows -> predictable tiles
        x = jnp.pad(x, ((0, Mp - M), (0, 0)))
    TN = _pick_tile(O, tn_target, _LANE)
    grid = (Mp // TM, O // TN)
    flops = 2 * Mp * D * O + 8 * Mp * D
    # x is DMA'd once per row tile (constant block index along j)
    bytes_accessed = 4 * Mp * D + 2 * D * O + 2 * Mp * O + 4 * (2 * D + O)
    out = pl.pallas_call(
        _ln_linear_kernel,
        out_shape=jax.ShapeDtypeStruct((Mp, O), out_dtype),
        grid=grid,
        in_specs=[
            pl.BlockSpec((TM, D), lambda i, j: (i, 0)),
            pl.BlockSpec((1, D), lambda i, j: (0, 0)),
            pl.BlockSpec((1, D), lambda i, j: (0, 0)),
            pl.BlockSpec((D, TN), lambda i, j: (0, j)),
            pl.BlockSpec((1, TN), lambda i, j: (0, j)),
        ],
        out_specs=pl.BlockSpec((TM, TN), lambda i, j: (i, j)),
        scratch_shapes=[pltpu.VMEM((TM, D), jnp.bfloat16)],  # cached LN(x)
        compiler_params=pltpu.CompilerParams(
            dimension_semantics=("parallel", "arbitrary"),
            vmem_limit_bytes=_VMEM_LIMIT),
        cost_estimate=pl.CostEstimate(flops=flops, transcendentals=Mp,
                                      bytes_accessed=int(bytes_accessed)),
    )(x, g, b, w, wb)
    return out[:M] if Mp != M else out


def pallas_ln_ffn_residual(x, g, b, w1, b1, w2, b2, *, tm_target=None,
                           th_target=None):
    if tm_target is None:
        tm_target = max(_SUBLANE, _TM_TARGET // 2)
    if th_target is None:
        th_target = _TH_TARGET
    M, D = x.shape
    Hd = w1.shape[1]
    TM = min(tm_target, _round_up(M, _SUBLANE))
    Mp = _round_up(M, TM)
    if Mp != M:
        x = jnp.pad(x, ((0, Mp - M), (0, 0)))
    TH = _pick_tile(Hd, th_target, _LANE)
    grid = (Mp // TM, Hd // TH)
    flops = 4 * Mp * D * Hd + 8 * Mp * D
    bytes_accessed = 4 * Mp * D * 2 + 2 * 2 * D * Hd + 4 * (Hd + 3 * D)
    out = pl.pallas_call(
        _ln_ffn_residual_kernel,
        out_shape=jax.ShapeDtypeStruct((Mp, D), jnp.float32),
        grid=grid,
        in_specs=[
            pl.BlockSpec((TM, D), lambda i, j: (i, 0)),
            pl.BlockSpec((1, D), lambda i, j: (0, 0)),
            pl.BlockSpec((1, D), lambda i, j: (0, 0)),
            pl.BlockSpec((D, TH), lambda i, j: (0, j)),
            pl.BlockSpec((1, TH), lambda i, j: (0, j)),
            pl.BlockSpec((TH, D), lambda i, j: (j, 0)),
            pl.BlockSpec((1, D), lambda i, j: (0, 0)),
        ],
        out_specs=pl.BlockSpec((TM, D), lambda i, j: (i, 0)),
        scratch_shapes=[pltpu.VMEM((TM, D), jnp.bfloat16),   # cached LN(x)
                        pltpu.VMEM((TM, D), jnp.float32)],   # f32 accumulator
        compiler_params=pltpu.CompilerParams(
            dimension_semantics=("parallel", "arbitrary"),
            vmem_limit_bytes=_VMEM_LIMIT),
        cost_estimate=pl.CostEstimate(flops=flops, transcendentals=Mp * Hd,
                                      bytes_accessed=int(bytes_accessed)),
    )(x, g, b, w1, b1, w2, b2)
    return out[:M] if Mp != M else out


def pallas_favor_attention(qkv, proj_g, ones_bd, wo, bo, resid, *,
                           heads, dim_head, nb_features, heads_per_group):
    # qkv:   (B, N, 3*inner) bf16, grouped layout [q_g | k_g | v_g] per head-group
    # proj_g:(g*dh, g*m) bf16; ones_bd: (g*dh, g) bf16
    # wo:    (inner, D) bf16; bo: (1, D) f32; resid: (B, N, D) f32
    B, N, _ = qkv.shape
    g = heads_per_group
    G = heads // g
    dh, m = dim_head, nb_features
    D = wo.shape[1]
    kernel = partial(_favor_attention_kernel, heads_per_group=g,
                     dim_head=dh, nb_features=m)
    # TODO(synk): for very long sequences on v7x (64 MiB VMEM) this should become
    # a two-pass, sequence-tiled kernel (pass 1: global k_max / k_sum / context,
    # pass 2: query-tiled features + output, with a parallel q-tile grid axis);
    # bf16 qkv + head-group tiling keep the per-step footprint modest here.
    return pl.pallas_call(
        kernel,
        out_shape=jax.ShapeDtypeStruct((B, N, D), jnp.float32),
        grid=(B, G),
        in_specs=[
            pl.BlockSpec((1, N, 3 * g * dh), lambda b, gi: (b, 0, gi)),
            pl.BlockSpec((g * dh, g * m), lambda b, gi: (0, 0)),
            pl.BlockSpec((g * dh, g), lambda b, gi: (0, 0)),
            pl.BlockSpec((g * dh, D), lambda b, gi: (gi, 0)),
            pl.BlockSpec((1, D), lambda b, gi: (0, 0)),
            pl.BlockSpec((1, N, D), lambda b, gi: (b, 0, 0)),
        ],
        out_specs=pl.BlockSpec((1, N, D), lambda b, gi: (b, 0, 0)),
        scratch_shapes=[pltpu.VMEM((N, D), jnp.float32)],    # fused-proj accumulator
        compiler_params=pltpu.CompilerParams(
            dimension_semantics=("parallel", "arbitrary"),
            vmem_limit_bytes=_VMEM_LIMIT),
    )(qkv, proj_g, ones_bd, wo, bo, resid)


# ----------------------------------------------------------------------------
# Parameter construction (deterministic; matches module __init__ shapes)
# ----------------------------------------------------------------------------

def gaussian_orthogonal_random_matrix(key, nb_rows, nb_cols):
    # scaling == 0 path of the reference implementation.
    nb_full_blocks = nb_rows // nb_cols
    keys = jax.random.split(key, nb_full_blocks + 2)
    blocks = []
    for i in range(nb_full_blocks):
        gm = jax.random.normal(keys[i], (nb_cols, nb_cols), dtype=jnp.float32)
        qm, _ = jnp.linalg.qr(gm)
        blocks.append(qm.T)
    remaining = nb_rows - nb_full_blocks * nb_cols
    if remaining > 0:
        gm = jax.random.normal(keys[nb_full_blocks], (nb_cols, nb_cols),
                               dtype=jnp.float32)
        qm, _ = jnp.linalg.qr(gm)
        blocks.append(qm.T[:remaining])
    final = jnp.concatenate(blocks, axis=0)
    multiplier = jnp.linalg.norm(
        jax.random.normal(keys[-1], (nb_rows, nb_cols), dtype=jnp.float32), axis=1)
    return multiplier[:, None] * final               # (nb_rows, nb_cols) == (m, dh)


def init_performer_params(key, *, dim, depth, heads, dim_head, ff_mult=4,
                          nb_features=None):
    inner = heads * dim_head
    if nb_features is None:
        nb_features = int(dim_head * math.log(dim_head))
    hidden = dim * ff_mult
    dn = float(dim_head) ** (-0.25)                  # data_normalizer
    g = _head_group_size(heads, dim_head)
    G = heads // g

    def lin(k, fan_in, fan_out, scale=0.05):
        kw, kb = jax.random.split(k)
        # stored as (in, out) so kernels compute x @ W (== torch x @ W^T)
        w = scale * jax.random.normal(kw, (fan_in, fan_out), dtype=jnp.float32)
        b = 0.01 * jax.random.normal(kb, (1, fan_out), dtype=jnp.float32)
        return w, b

    # block-ones (g*dh, g): one column of ones per head -> sum(x^2) on the MXU
    ones_bd = jnp.zeros((g * dim_head, g), jnp.float32)
    for h in range(g):
        ones_bd = ones_bd.at[h * dim_head:(h + 1) * dim_head, h].set(1.0)
    ones_bd = ones_bd.astype(jnp.bfloat16)

    layers = []
    keys = jax.random.split(key, depth)
    for li in range(depth):
        ks = jax.random.split(keys[li], 7)
        wq, bq = lin(ks[0], dim, inner)
        wk, bk = lin(ks[1], dim, inner)
        wv, bv = lin(ks[2], dim, inner)
        wo, bo = lin(ks[3], inner, dim)
        w1, b1 = lin(ks[4], dim, hidden)
        w2, b2 = lin(ks[5], hidden, dim)

        # pack q/k/v columns group-major [q_g0|k_g0|v_g0 | q_g1|k_g1|v_g1 | ...]
        # (a free weight-column permutation) so the attention kernel reads one
        # contiguous, lane-aligned (N, 3*g*dh) block per head group.
        wcols, bcols = [], []
        for gi in range(G):
            sl = slice(gi * g * dim_head, (gi + 1) * g * dim_head)
            wcols += [wq[:, sl], wk[:, sl], wv[:, sl]]
            bcols += [bq[:, sl], bk[:, sl], bv[:, sl]]
        wqkv = jnp.concatenate(wcols, axis=1)         # (dim, 3*inner)
        bqkv = jnp.concatenate(bcols, axis=1)         # (1, 3*inner)

        # per-layer FAVOR+ projection (shared by all heads, as in the reference),
        # pre-scaled by data_normalizer, packed block-diagonally per head *group*.
        proj = gaussian_orthogonal_random_matrix(ks[6], nb_features, dim_head)
        projT = proj.T * dn                           # (dh, m)
        proj_g = jnp.zeros((g * dim_head, g * nb_features), jnp.float32)
        for h in range(g):
            proj_g = proj_g.at[h * dim_head:(h + 1) * dim_head,
                               h * nb_features:(h + 1) * nb_features].set(projT)

        layers.append(dict(
            ln1_g=jnp.ones((1, dim), jnp.float32), ln1_b=jnp.zeros((1, dim), jnp.float32),
            ln2_g=jnp.ones((1, dim), jnp.float32), ln2_b=jnp.zeros((1, dim), jnp.float32),
            wqkv=wqkv.astype(jnp.bfloat16), bqkv=bqkv,
            wo=wo.astype(jnp.bfloat16), bo=bo,
            w1=w1.astype(jnp.bfloat16), b1=b1,
            w2=w2.astype(jnp.bfloat16), b2=b2,
            proj_g=proj_g.astype(jnp.bfloat16),
        ))
    cfg = dict(dim=dim, depth=depth, heads=heads, dim_head=dim_head,
               nb_features=nb_features, hidden=hidden,
               heads_per_group=g, num_groups=G)
    return dict(layers=layers, cfg=cfg, ones_bd=ones_bd)


# ----------------------------------------------------------------------------
# Forward pass (Performer, non-causal, no local heads, no cross-attend, eval)
# ----------------------------------------------------------------------------

def performer_forward(params, x):
    # SequentialSequence: x = x + attn(LN(x)); x = x + ff(LN(x)) per layer.
    cfg = params["cfg"]
    heads, dh, m = cfg["heads"], cfg["dim_head"], cfg["nb_features"]
    gsz = cfg["heads_per_group"]
    ones_bd = params["ones_bd"]
    B, N, D = x.shape
    xf = x.reshape(B * N, D)                          # free reshape, no transpose
    for p in params["layers"]:
        # --- attention branch: x = x + Wo @ FAVOR(Wqkv @ LN(x)) + bo (fused) ---
        qkv = pallas_ln_linear(xf, p["ln1_g"], p["ln1_b"], p["wqkv"], p["bqkv"])
        xf = pallas_favor_attention(
            qkv.reshape(B, N, -1), p["proj_g"], ones_bd, p["wo"], p["bo"],
            xf.reshape(B, N, D),
            heads=heads, dim_head=dh, nb_features=m,
            heads_per_group=gsz).reshape(B * N, D)
        # --- feed-forward branch: x = x + W2(GELU(W1(LN(x)))) ---
        xf = pallas_ln_ffn_residual(xf, p["ln2_g"], p["ln2_b"],
                                    p["w1"], p["b1"], p["w2"], p["b2"])
    return xf.reshape(B, N, D)


# ----------------------------------------------------------------------------
# Main
# ----------------------------------------------------------------------------

if __name__ == "__main__":
    # Small, module-consistent config: dim=32, depth=2, heads=4, dim_head=8,
    # nb_features defaults to int(8 * ln 8) = 16.
    key = jax.random.PRNGKey(0)
    k_params, k_x = jax.random.split(key)

    DIM, DEPTH, HEADS, DIM_HEAD = 32, 2, 4, 8
    B, N = 2, 8

    params = init_performer_params(k_params, dim=DIM, depth=DEPTH,
                                   heads=HEADS, dim_head=DIM_HEAD)
    x = jax.random.normal(k_x, (B, N, DIM), dtype=jnp.float32)

    out = jax.block_until_ready(performer_forward(params, x))
    assert out.shape == (B, N, DIM)
    assert bool(jnp.all(jnp.isfinite(out)))
    # TODO(synk): reversible / cross-attend / local-attention / causal / dropout /
    # projection-redraw branches of the reference module are not exercised by the
    # default eval config and are not implemented.
    print("KERNEL_OK")
</pallas_src>

<mosaic_0001>
module attributes {stable_mosaic.version = 11 : i64} {
  func.func @_ln_linear_kernel(%arg0: i32, %arg1: i32, %arg2: memref<16x32xf32, #tpu.memory_space<vmem>>, %arg3: memref<1x32xf32, #tpu.memory_space<vmem>>, %arg4: memref<1x32xf32, #tpu.memory_space<vmem>>, %arg5: memref<32x96xbf16, #tpu.memory_space<vmem>>, %arg6: memref<1x96xf32, #tpu.memory_space<vmem>>, %arg7: memref<16x96xbf16, #tpu.memory_space<vmem>>, %arg8: memref<16x32xbf16, #tpu.memory_space<vmem>>) attributes {dimension_semantics = [#tpu.dimension_semantics<parallel>, #tpu.dimension_semantics<arbitrary>], iteration_bounds = array<i64: 1, 1>, scalar_prefetch = 0 : i64, scratch_operands = 1 : i64, tpu.core_type = #tpu.core_type<tc>, window_params = [{transform_indices = @transform_0, window_bounds = array<i64: 16, 32>}, {pipeline_mode = #tpu.pipeline_mode<synchronous>, transform_indices = @transform_1, window_bounds = array<i64: 1, 32>}, {pipeline_mode = #tpu.pipeline_mode<synchronous>, transform_indices = @transform_2, window_bounds = array<i64: 1, 32>}, {transform_indices = @transform_3, window_bounds = array<i64: 32, 96>}, {transform_indices = @transform_4, window_bounds = array<i64: 1, 96>}, {transform_indices = @transform_5, window_bounds = array<i64: 16, 96>}]} {
    %c0_i32 = arith.constant 0 : i32
    %0 = arith.cmpi eq, %arg1, %c0_i32 : i32
    %1 = arith.extui %0 : i1 to i32
    %c0_i32_0 = arith.constant 0 : i32
    %2 = arith.cmpi ne, %1, %c0_i32_0 : i32
    scf.if %2 {
      %c0_8 = arith.constant 0 : index
      %c0_9 = arith.constant 0 : index
      %11 = vector.load %arg2[%c0_8, %c0_9] : memref<16x32xf32, #tpu.memory_space<vmem>>, vector<16x32xf32>
      %cst_10 = arith.constant dense<0.000000e+00> : vector<16xf32>
      %12 = vector.multi_reduction <add>, %11, %cst_10 [1] : vector<16x32xf32> to vector<16xf32>
      %13 = vector.shape_cast %12 : vector<16xf32> to vector<16x1xf32>
      %cst_11 = arith.constant 3.200000e+01 : f32
      %14 = vector.broadcast %cst_11 : f32 to vector<16x1xf32>
      %15 = arith.divf %13, %14 : vector<16x1xf32>
      %16 = vector.broadcast %15 : vector<16x1xf32> to vector<16x32xf32>
      %17 = arith.subf %11, %16 : vector<16x32xf32>
      %18 = arith.mulf %17, %17 : vector<16x32xf32>
      %cst_12 = arith.constant dense<0.000000e+00> : vector<16xf32>
      %19 = vector.multi_reduction <add>, %18, %cst_12 [1] : vector<16x32xf32> to vector<16xf32>
      %20 = vector.shape_cast %19 : vector<16xf32> to vector<16x1xf32>
      %cst_13 = arith.constant 3.200000e+01 : f32
      %21 = vector.broadcast %cst_13 : f32 to vector<16x1xf32>
      %22 = arith.divf %20, %21 : vector<16x1xf32>
      %23 = vector.broadcast %15 : vector<16x1xf32> to vector<16x32xf32>
      %24 = arith.subf %11, %23 : vector<16x32xf32>
      %cst_14 = arith.constant 9.99999974E-6 : f32
      %25 = vector.broadcast %cst_14 : f32 to vector<16x1xf32>
      %26 = arith.addf %22, %25 : vector<16x1xf32>
      %27 = math.rsqrt %26 : vector<16x1xf32>
      %28 = vector.broadcast %27 : vector<16x1xf32> to vector<16x32xf32>
      %29 = arith.mulf %24, %28 : vector<16x32xf32>
      %c0_15 = arith.constant 0 : index
      %c0_16 = arith.constant 0 : index
      %30 = vector.load %arg3[%c0_15, %c0_16] : memref<1x32xf32, #tpu.memory_space<vmem>>, vector<1x32xf32>
      %31 = vector.broadcast %30 : vector<1x32xf32> to vector<16x32xf32>
      %32 = arith.mulf %29, %31 : vector<16x32xf32>
      %c0_17 = arith.constant 0 : index
      %c0_18 = arith.constant 0 : index
      %33 = vector.load %arg4[%c0_17, %c0_18] : memref<1x32xf32, #tpu.memory_space<vmem>>, vector<1x32xf32>
      %34 = vector.broadcast %33 : vector<1x32xf32> to vector<16x32xf32>
      %35 = arith.addf %32, %34 : vector<16x32xf32>
      %36 = arith.truncf %35 : vector<16x32xf32> to vector<16x32xbf16>
      %c0_19 = arith.constant 0 : index
      %c0_20 = arith.constant 0 : index
      %37 = vector.load %arg8[%c0_19, %c0_20] : memref<16x32xbf16, #tpu.memory_space<vmem>>, vector<16x32xbf16>
      tpu.vector_store %arg8[%c0_19, %c0_20], %36 {strides = array<i32>} : memref<16x32xbf16, #tpu.memory_space<vmem>>, vector<16x32xbf16>,
    } else {
    }
    %c0 = arith.constant 0 : index
    %c0_1 = arith.constant 0 : index
    %3 = vector.load %arg8[%c0, %c0_1] : memref<16x32xbf16, #tpu.memory_space<vmem>>, vector<16x32xbf16>
    %c0_2 = arith.constant 0 : index
    %c0_3 = arith.constant 0 : index
    %4 = vector.load %arg5[%c0_2, %c0_3] : memref<32x96xbf16, #tpu.memory_space<vmem>>, vector<32x96xbf16>
    %cst = arith.constant dense<0.000000e+00> : vector<16x96xf32>
    %5 = tpu.matmul %3, %4, %cst {dimension_numbers = #tpu.dot_dimension_numbers<[1], [0], [0], [1], [0, 0, 1, 1], [], []>} : vector<16x32xbf16>, vector<32x96xbf16>, vector<16x96xf32> -> vector<16x96xf32>
    %c0_4 = arith.constant 0 : index
    %c0_5 = arith.constant 0 : index
    %6 = vector.load %arg6[%c0_4, %c0_5] : memref<1x96xf32, #tpu.memory_space<vmem>>, vector<1x96xf32>
    %7 = vector.broadcast %6 : vector<1x96xf32> to vector<16x96xf32>
    %8 = arith.addf %5, %7 : vector<16x96xf32>
    %9 = arith.truncf %8 : vector<16x96xf32> to vector<16x96xbf16>
    %c0_6 = arith.constant 0 : index
    %c0_7 = arith.constant 0 : index
    %10 = vector.load %arg7[%c0_6, %c0_7] : memref<16x96xbf16, #tpu.memory_space<vmem>>, vector<16x96xbf16>
    tpu.vector_store %arg7[%c0_6, %c0_7], %9 {strides = array<i32>} : memref<16x96xbf16, #tpu.memory_space<vmem>>, vector<16x96xbf16>,
    return
  }
  func.func @transform_0(%arg0: i32, %arg1: i32) -> (i32, i32) {
    %c0_i32 = arith.constant 0 : i32
    %c0_i32_0 = arith.constant 0 : i32
    return %arg0, %c0_i32 : i32, i32
  }
  func.func @transform_1(%arg0: i32, %arg1: i32) -> (i32, i32) {
    %c0_i32 = arith.constant 0 : i32
    %c0_i32_0 = arith.constant 0 : i32
    %c0_i32_1 = arith.constant 0 : i32
    return %c0_i32, %c0_i32_0 : i32, i32
  }
  func.func @transform_2(%arg0: i32, %arg1: i32) -> (i32, i32) {
    %c0_i32 = arith.constant 0 : i32
    %c0_i32_0 = arith.constant 0 : i32
    %c0_i32_1 = arith.constant 0 : i32
    return %c0_i32, %c0_i32_0 : i32, i32
  }
  func.func @transform_3(%arg0: i32, %arg1: i32) -> (i32, i32) {
    %c0_i32 = arith.constant 0 : i32
    %c0_i32_0 = arith.constant 0 : i32
    return %c0_i32, %arg1 : i32, i32
  }
  func.func @transform_4(%arg0: i32, %arg1: i32) -> (i32, i32) {
    %c0_i32 = arith.constant 0 : i32
    %c0_i32_0 = arith.constant 0 : i32
    return %c0_i32, %arg1 : i32, i32
  }
  func.func @transform_5(%arg0: i32, %arg1: i32) -> (i32, i32) {
    %c0_i32 = arith.constant 0 : i32
    return %arg0, %arg1 : i32, i32
  }
}

</mosaic_0001>

<llo_original>
// kernel: tpu_custom_call.1
$region0: #{tpu_custom_call.1}
  #allocation0 [shape = 'u32[]', space=smem, size = 0x4, offset = 0x4, fixed_abs, tag = 'smem constant byte address 0x4 - core index']
  #allocation1 [shape = 'u32[144,128]{1,0:T(1,128)}', space=vmem, size = 0x12000, scoped, tag = 'internal scratch']
  #allocation2 [shape = 'bf16[16,32]{1,0:T(8,128)(2,1)}', space=vmem, size = 0x1000, scoped, tag = 'scratch operand']
  %s0 = inlined_call_operand.hbm [shape: f32[16,32], index: 0, kind: input, shape index: {}]
  %s1 = inlined_call_operand.vmem [shape: f32[1,32], index: 1, kind: input, shape index: {}]
  %s2 = inlined_call_operand.vmem [shape: f32[1,32], index: 2, kind: input, shape index: {}]
  %s3 = inlined_call_operand.hbm [shape: bf16[32,96], index: 3, kind: input, shape index: {}]
  %s4 = inlined_call_operand.vmem [shape: f32[1,96], index: 4, kind: input, shape index: {}]
  %s5 = inlined_call_operand.hbm [shape: bf16[16,96], index: 5, kind: output, shape index: {}]
  %s6 = sld [smem:[#allocation0]]
  $region42: #{tpu_custom_call.1} parent=0
    _
  %s8 = ssub.s32 1, %s6
  %s9 = scalar_select 0, %s8, %s6
  $region1: #{tpu_custom_call.1} parent=0
    #allocation3 [shape = 'u8[8192]{0}', space=vmem, size = 0x2000, scoped, tag = 'input window, operand 0, single buffered']
    #allocation4 [shape = 's32[1]{0}', space=sflag, size = 0x4, scoped, tag = 'scoped memory for tpu_custom_call.1']
    #allocation5 [shape = 's32[1]{0}', space=sflag, size = 0x4, scoped, tag = 'scoped memory for tpu_custom_call.1']
    #allocation6 [shape = 'u8[8192]{0}', space=vmem, size = 0x2000, scoped, tag = 'input window, operand 3, single buffered']
    #allocation7 [shape = 's32[1]{0}', space=sflag, size = 0x4, scoped, tag = 'scoped memory for tpu_custom_call.1']
    #allocation8 [shape = 'u8[4096]{0}', space=vmem, size = 0x1000, scoped, tag = 'output window, operand 0, single buffered']
    %10 = vsyncpa [#allocation4], 0
    %11 = vsyncpa [#allocation7], 0
    %12 = vsyncpa [#allocation5], 0
    // Predicated region
    $region2: #{tpu_custom_call.1} parent=1 // pred_check
      _
    $region3: #{tpu_custom_call.1} parent=1 // pred_check_branch
      %14 = sbr.rel (0) target = $region5
    $region4: #{tpu_custom_call.1} parent=1 // pred_region
      %s16 = ssub.s32 256, 256
      %17 = vsyncadd [#allocation4], %s16
      %s18 = sshll.u32 [#allocation3], 4
      %s19 = int_to_ptr.vmem [resolvable:$true] %s18
      %24 = dma.hbm_to_vmem [thread:$0]  %s0, 256, %s19, [#allocation4], 128, 128, 8
    $region5: #{tpu_custom_call.1} parent=1 // pred_fallthru
      _
    // Predicated region
    $region6: #{tpu_custom_call.1} parent=1 // pred_check
      _
    $region7: #{tpu_custom_call.1} parent=1 // pred_check_branch
      %26 = sbr.rel (0) target = $region9
    $region8: #{tpu_custom_call.1} parent=1 // pred_region
      _
    $region9: #{tpu_custom_call.1} parent=1 // pred_fallthru
      _
    // Predicated region
    $region10: #{tpu_custom_call.1} parent=1 // pred_check
      _
    $region11: #{tpu_custom_call.1} parent=1 // pred_check_branch
      %28 = sbr.rel (0) target = $region13
    $region12: #{tpu_custom_call.1} parent=1 // pred_region
      _
    $region13: #{tpu_custom_call.1} parent=1 // pred_fallthru
      _
    // Predicated region
    $region14: #{tpu_custom_call.1} parent=1 // pred_check
      _
    $region15: #{tpu_custom_call.1} parent=1 // pred_check_branch
      %30 = sbr.rel (0) target = $region17
    $region16: #{tpu_custom_call.1} parent=1 // pred_region
      %s32 = ssub.s32 256, 256
      %33 = vsyncadd [#allocation7], %s32
      %s34 = sshll.u32 [#allocation6], 4
      %s35 = int_to_ptr.vmem [resolvable:$true] %s34
      %40 = dma.hbm_to_vmem [thread:$0]  %s3, 256, %s35, [#allocation7], 64, 64, 4
    $region17: #{tpu_custom_call.1} parent=1 // pred_fallthru
      _
    // Predicated region
    $region18: #{tpu_custom_call.1} parent=1 // pred_check
      _
    $region19: #{tpu_custom_call.1} parent=1 // pred_check_branch
      %42 = sbr.rel (0) target = $region21
    $region20: #{tpu_custom_call.1} parent=1 // pred_region
      _
    $region21: #{tpu_custom_call.1} parent=1 // pred_fallthru
      _
    // Predicated region
    $region22: #{tpu_custom_call.1} parent=1 // pred_check
      _
    $region23: #{tpu_custom_call.1} parent=1 // pred_check_branch
      %44 = sbr.rel (0) target = $region25
    $region24: #{tpu_custom_call.1} parent=1 // pred_region
      %45 = dma.done [#allocation4], 256
    $region25: #{tpu_custom_call.1} parent=1 // pred_fallthru
      _
    // Predicated region
    $region26: #{tpu_custom_call.1} parent=1 // pred_check
      _
    $region27: #{tpu_custom_call.1} parent=1 // pred_check_branch
      %47 = sbr.rel (0) target = $region29
    $region28: #{tpu_custom_call.1} parent=1 // pred_region
      %48 = dma.done [#allocation7], 256
    $region29: #{tpu_custom_call.1} parent=1 // pred_fallthru
      _
    %p50 = scmp.eq.s32.totalorder 0, 0
    // Predicated region
    $region30: #{tpu_custom_call.1} parent=1 // pred_check
      %p51 = pneg %p50
    $region31: #{tpu_custom_call.1} parent=1 // pred_check_branch
      %53 = sbr.rel (%p51) target = $region33
    $region32: #{tpu_custom_call.1} parent=1 // pred_region
      %v54 = vld [vmem:[#allocation3] sm:$0xff]
      %v55 = vld [vmem:[#allocation3 + $0x8] sm:$0xff]
      %vm56 = vcmask 261120
      %v57 = vsel %vm56, %v54, 0.0
      %58 = vadd.xlane.f32.xlu0 %v57
      %v59 = vpop.xlane.xlu0 %58
      %v60 = vsel %vm56, %v55, 0.0
      %61 = vadd.xlane.f32.xlu0 %v60
      %v62 = vpop.xlane.xlu0 %61
      %v63 = vrcp.pop 32.0
      %v64 = vmul.f32 %v59, %v63
      %v65 = vmul.f32 %v62, %v63
      %v66 = vsub.f32 %v54, %v64
      %v67 = vsub.f32 %v55, %v65
      %v68 = vmul.f32 %v66, %v66
      %v69 = vmul.f32 %v67, %v67
      %v70 = vsel %vm56, %v68, 0.0
      %71 = vadd.xlane.f32.xlu0 %v70
      %v72 = vpop.xlane.xlu0 %71
      %v73 = vsel %vm56, %v69, 0.0
      %74 = vadd.xlane.f32.xlu0 %v73
      %v75 = vpop.xlane.xlu0 %74
      %v76 = vmul.f32 %v72, %v63
      %v77 = vmul.f32 %v75, %v63
      %v78 = vadd.f32 %v76, 1e-05
      %v79 = vadd.f32 %v77, 1e-05
      %v80 = vrsqrt.pop %v78
      %v81 = vrsqrt.pop %v79
      %v82 = vmul.f32 %v66, %v80
      %v83 = vmul.f32 %v67, %v81
      %v84 = vld [vmem:[%s1] sm:$0x1]
      %v86 = vlaneseq
      %v87 = vshrl.u32 %v86, 7
      %v88 = vsub.s32 0, %v87
      %v89 = vrot.slane %v84, %v88
      %v91 = vmul.f32 %v82, %v89
      %v92 = vmul.f32 %v83, %v89
      %v93 = vld [vmem:[%s2] sm:$0x1]
      %v95 = vlaneseq
      %v96 = vshrl.u32 %v95, 7
      %v97 = vsub.s32 0, %v96
      %v98 = vrot.slane %v93, %v97
      %v100 = vadd.f32 %v91, %v98
      %v101 = vadd.f32 %v92, %v98
      %v102 = vpack.c.bf16 %v101, %v100
      %v104 = vunpack.c.l.b16 %v102
      %v105 = vunpack.c.h.b16 %v102
      %v106 = vpack.c.b16 %v104, %v104
      %v107 = vpack.c.b16 %v105, %v105
      %vm110 = vcmask 257024
      %111 = vst.msk [vmem:[#allocation2] sm:$0xf] %vm110, %v106
      %112 = vst.msk [vmem:[#allocation2 + $0x4] sm:$0xf] %vm110, %v107
    $region33: #{tpu_custom_call.1} parent=1 // pred_fallthru
      _
    %v113 = vld [vmem:[#allocation2] sm:$0xf]
    %v114 = vld [vmem:[#allocation2 + $0x4] sm:$0xf]
    %v115 = vld [vmem:[#allocation6] sm:$0xf]
    %v116 = vld [vmem:[#allocation6 + $0x4] sm:$0xf]
    %v117 = vld [vmem:[#allocation6 + $0x8] sm:$0xf]
    %v118 = vld [vmem:[#allocation6 + $0xc] sm:$0xf]
    %v119 = vld [vmem:[%s4] sm:$0x1]
    %v121 = vlaneseq
    %v122 = vshrl.u32 %v121, 7
    %v123 = vsub.s32 0, %v122
    %v124 = vrot.slane %v119, %v123
    %v128 = vunpack.c.l.b16 %v113
    %v129 = vunpack.c.l.b16 %v114
    %v130 = vpack.c.b16 %v129, %v128
    %v135 = vunpack.c.l.b16 %v115
    %v136 = vunpack.c.l.b16 %v116
    %v137 = vunpack.c.l.b16 %v117
    %v138 = vunpack.c.l.b16 %v118
    %v139 = vpack.c.b16 %v136, %v135
    %v140 = vpack.c.b16 %v138, %v137
    %vm143 = vcmask 261120
    %v145 = vsel %vm143, %v130, 0
    %147 = vmatprep.subr.bf16.mxu0 0
    %148 = vmatpush1.bf16.msra.mxu0 0
    %149 = vmatprep.subr.bf16.mxu0 0
    %150 = vmatpush1.bf16.msra.mxu0 0
    %151 = vmatprep.subr.bf16.mxu0 0
    %152 = vmatpush1.bf16.msra.mxu0 0
    %153 = vmatprep.subr.bf16.mxu0 0
    %154 = vmatpush1.bf16.msra.mxu0 0
    %155 = vmatprep.subr.bf16.mxu0 0
    %156 = vmatpush1.bf16.msra.mxu0 0
    %157 = vmatprep.subr.bf16.mxu0 0
    %158 = vmatpush1.bf16.msra.mxu0 0
    %159 = vmatprep.subr.bf16.mxu0 0
    %160 = vmatpush1.bf16.msra.mxu0 %v140
    %161 = vmatprep.subr.bf16.mxu0 0
    %162 = vmatpush1.bf16.msra.mxu0 %v139
    %163 = vmatprep.subr.bf16.mxu0 0
    %164 = vmatpush2.bf16.msra.mxu0 0
    %165 = vmatprep.subr.bf16.mxu0 0
    %166 = vmatpush2.bf16.msra.mxu0 0
    %167 = vmatprep.subr.bf16.mxu0 0
    %168 = vmatpush2.bf16.msra.mxu0 0
    %169 = vmatprep.subr.bf16.mxu0 0
    %170 = vmatpush2.bf16.msra.mxu0 0
    %171 = vmatprep.subr.bf16.mxu0 0
    %172 = vmatpush2.bf16.msra.mxu0 0
    %173 = vmatprep.subr.bf16.mxu0 0
    %174 = vmatpush2.bf16.msra.mxu0 0
    %175 = vmatprep.subr.bf16.mxu0 0
    %176 = vmatpush2.bf16.msra.mxu0 0
    %177 = vmatprep.subr.bf16.mxu0 0
    %178 = vmatpush2.bf16.msra.mxu0 0
    %179 = vmatprep.mubr.bf16.mxu0 0
    %180 = vmatmul.mubr.bf16.gmra.mxu0 %v145
    %v181 = vpop.f32.mrf.mxu0
    %v182 = vadd.f32 %v124, %v181
    %v183 = vpop.f32.mrf.mxu0
    %v184 = vpop.f32.mrf.mxu0
    %v185 = vadd.f32 %v124, %v184
    %v186 = vpop.f32.mrf.mxu0
    %187 = vdwg.mxu0
    %v188 = vpack.c.bf16 %v185, %v182
    %v190 = vunpack.c.l.b16 %v188
    %v191 = vunpack.c.h.b16 %v188
    %v192 = vpack.c.b16 %v190, %v190
    %v193 = vpack.c.b16 %v191, %v191
    %vm196 = vcmask 781312
    %197 = vst.msk [vmem:[#allocation8] sm:$0xf] %vm196, %v192
    %198 = vst.msk [vmem:[#allocation8 + $0x4] sm:$0xf] %vm196, %v193
    // Predicated region
    $region34: #{tpu_custom_call.1} parent=1 // pred_check
      _
    $region35: #{tpu_custom_call.1} parent=1 // pred_check_branch
      %200 = sbr.rel (0) target = $region37
    $region36: #{tpu_custom_call.1} parent=1 // pred_region
      %s202 = ssub.s32 128, 128
      %203 = vsyncadd [#allocation5], %s202
      %s204 = sshll.u32 [#allocation8], 4
      %s205 = int_to_ptr.vmem [resolvable:$true] %s204
      %210 = dma.vmem_to_hbm [thread:$0]  %s205, 128, %s5, [#allocation5], 64, 64, 4
    $region37: #{tpu_custom_call.1} parent=1 // pred_fallthru
      _
    // Predicated region
    $region38: #{tpu_custom_call.1} parent=1 // pred_check
      _
    $region39: #{tpu_custom_call.1} parent=1 // pred_check_branch
      %212 = sbr.rel (0) target = $region41
    $region40: #{tpu_custom_call.1} parent=1 // pred_region
      %213 = dma.done [#allocation5], 128
    $region41: #{tpu_custom_call.1} parent=1 // pred_fallthru
      _
    %214 = vsyncpa [#allocation4], 1
    %215 = vsyncpa [#allocation7], 1
    %216 = vsyncpa [#allocation5], 1

</llo_original>
